<compile_context>
chip_gen: v7x
topology: tpu7x:2x2x1
jax: 0.10.0
libtpu: 0.0.40
codegen_flags: <defaults>
</compile_context>

<pallas_src>
import functools

import jax
import jax.numpy as jnp
from jax import lax
from jax.experimental import pallas as pl
from jax.experimental.pallas import tpu as pltpu


def _num_tensorcores():
    """Best-effort probe for TensorCores per device (2 on v7x, 1 on v5e/v6e).
    Falls back to 1 when no core-count attribute is exposed."""
    try:
        dev = jax.devices()[0]
        for attr in ("num_cores", "core_count"):
            n = getattr(dev, attr, None)
            if n:
                return int(n)
        n = getattr(pltpu.get_tpu_info(), "num_cores", None)
        if n:
            return int(n)
    except Exception:
        pass
    return 1


def _ce_kernel(n_rows, tiles_per_split, preds_ref, tgt_ref, ce_ref, cnt_ref):
    """One grid step = one (d, tile) column-tile of rows for one split.
    Accumulates per-class BCE sums into the resident (1, d, 1) output and the
    masked-row count into the resident (1, 1, 1) output."""
    c = pl.program_id(0)   # split (parallel axis)
    i = pl.program_id(1)   # tile within split (accumulation axis)

    @pl.when(i == 0)
    def _init():
        ce_ref[...] = jnp.zeros_like(ce_ref)
        cnt_ref[...] = jnp.zeros_like(cnt_ref)

    tile = preds_ref.shape[1]
    # Global row ids of this tile.  Computed from the *unclamped* grid position
    # (only the index_map clamps the DMA target), so fully out-of-range tiles
    # and the ragged tail contribute exactly zero.  NOTE: keep this asymmetric
    # (clamp in index_map, no clamp here) -- clamping both double-counts.
    row0 = (c * tiles_per_split + i) * tile
    col_ids = row0 + lax.broadcasted_iota(jnp.int32, (1, tile), 1)
    valid = col_ids < n_rows                                      # (1, tile)

    # Upcast after the DMA (inputs stay in their native dtype in HBM).
    # Out-of-range columns get their target forced to 0 so they fail the
    # "any != 0" test exactly like masked rows.
    t = jnp.where(valid, tgt_ref[...].astype(jnp.float32), 0.0)   # (d, tile)
    keep = jnp.any(t != 0.0, axis=0, keepdims=True)               # (1, tile)
    # Excluded rows never contribute (PyTorch masks before BCE); zero their
    # logits so no garbage / non-finite values enter the transcendentals.
    p = jnp.where(keep, preds_ref[...].astype(jnp.float32), 0.0)  # (d, tile)
    mask = keep.astype(jnp.float32)                               # (1, tile)

    # Stable softmax pieces.  No divide needed:
    #   log(prob)     = (p - m) - log(s)
    #   log(1 - prob) = log(s - e) - log(s)       (s >= e, so s - e >= 0)
    m = jnp.max(p, axis=0, keepdims=True)                         # (1, tile)
    e = jnp.exp(p - m)                                            # (d, tile)
    s = jnp.sum(e, axis=0, keepdims=True)                         # (1, tile)
    log_s = jnp.log(s)                                            # (1, tile)
    log_p = jnp.maximum((p - m) - log_s, -100.0)                  # BCE clamp @ -100
    log_1mp = jnp.maximum(jnp.log(s - e) - log_s, -100.0)

    bce = -(t * log_p + (1.0 - t) * log_1mp) * mask               # (d, tile)

    ce_ref[...] += jnp.sum(bce, axis=-1, keepdims=True)[None]     # (1, d, 1)
    cnt_ref[...] += jnp.sum(mask, axis=-1, keepdims=True)[None]   # (1, 1, 1)


@functools.partial(jax.jit, static_argnames=("tile_rows",))
def ce_sums_and_count(preds, target, tile_rows=16384):
    """Returns (per-class BCE sums of shape (d,), masked-row count scalar)."""
    d = preds.shape[-1]
    # Lane-dense layout: rows on the 128-lane axis, classes on sublanes.
    # Native dtype is kept through the DMA (no f32 copy in HBM).
    preds_t = preds.reshape(-1, d).T                               # (d, N)
    tgt_t = target.reshape(-1, d).T                                # (d, N)
    n_rows = preds_t.shape[1]

    # Row tile: full array when small (block dim == full dim is always legal),
    # otherwise tile_rows rounded to a multiple of 128 lanes.
    tile_rows = max(128, (tile_rows // 128) * 128)
    tile = n_rows if n_rows <= tile_rows else tile_rows
    n_tiles = pl.cdiv(n_rows, tile)

    # Split the tile loop across the chip's TensorCores (2 on v7x).  On
    # single-core chips (v5e/v6e) this stays 1, so there is no redundant work.
    n_splits = min(_num_tensorcores(), 2, n_tiles)
    tiles_per_split = pl.cdiv(n_tiles, n_splits)

    def _block_index(c, i):
        # Clamp so the DMA never targets a block past the array; redundant
        # tiles are zeroed in-kernel via the unclamped row-id mask.
        return (0, jnp.minimum(c * tiles_per_split + i, n_tiles - 1))

    kernel = functools.partial(_ce_kernel, n_rows, tiles_per_split)

    ce, cnt = pl.pallas_call(
        kernel,
        out_shape=(
            jax.ShapeDtypeStruct((n_splits, d, 1), jnp.float32),
            jax.ShapeDtypeStruct((n_splits, 1, 1), jnp.float32),
        ),
        grid_spec=pltpu.PrefetchScalarGridSpec(
            num_scalar_prefetch=0,
            grid=(n_splits, tiles_per_split),
            in_specs=[
                pl.BlockSpec((d, tile), _block_index),
                pl.BlockSpec((d, tile), _block_index),
            ],
            out_specs=(
                pl.BlockSpec((1, d, 1), lambda c, i: (c, 0, 0)),
                pl.BlockSpec((1, 1, 1), lambda c, i: (c, 0, 0)),
            ),
        ),
        compiler_params=pltpu.CompilerParams(
            dimension_semantics=("parallel", "arbitrary")),
    )(preds_t, tgt_t)
    return jnp.sum(ce, axis=(0, 2)), jnp.sum(cnt)


# ------------------------- metric "module" wrapper -------------------------

ATOM_DECODER = ("H", "C", "N", "O", "F", "B", "Br", "Cl", "I", "P", "S", "Se", "Si")
ATOM_CLASS_NAMES = {
    "H": "HydrogenCE", "C": "CarbonCE", "N": "NitroCE", "O": "OxyCE",
    "F": "FluorCE", "B": "BoronCE", "Br": "BrCE", "Cl": "ClCE", "I": "IodineCE",
    "P": "PhosphorusCE", "S": "SulfurCE", "Se": "SeCE", "Si": "SiCE",
}
BOND_CLASS_NAMES = ("NoBondCE", "SingleCE", "DoubleCE", "TripleCE", "AromaticCE")


class TrainMolecularMetricsPallas:
    """Stateful equivalent of TrainMolecularMetrics (no learnable parameters)."""

    def __init__(self, atom_decoder=ATOM_DECODER):
        self.atom_decoder = tuple(atom_decoder)
        self.n_atom = len(self.atom_decoder)
        self.n_bond = 5
        self.reset()

    def reset(self):
        self.atom_ce = jnp.zeros((self.n_atom,), jnp.float32)
        self.atom_samples = jnp.zeros((), jnp.float32)
        self.bond_ce = jnp.zeros((self.n_bond,), jnp.float32)
        self.bond_samples = jnp.zeros((), jnp.float32)

    def forward(self, masked_pred_X, masked_pred_E, true_X, true_E, log: bool):
        # TODO(synk): the X (d=13) and E (d=5) passes could be fused into one
        # pallas_call to halve launch overhead; kept separate to avoid padding E.
        ce_x, cnt_x = ce_sums_and_count(masked_pred_X, true_X)
        ce_e, cnt_e = ce_sums_and_count(masked_pred_E, true_E)
        self.atom_ce = self.atom_ce + ce_x
        self.atom_samples = self.atom_samples + cnt_x
        self.bond_ce = self.bond_ce + ce_e
        self.bond_samples = self.bond_samples + cnt_e
        if log:
            return self.compute(prefix="train/")
        return None

    __call__ = forward

    def compute(self, prefix=""):
        # Single device->host transfer for all 18 metrics instead of 18 syncs.
        atom_vals, bond_vals = jax.device_get(
            (self.atom_ce / self.atom_samples, self.bond_ce / self.bond_samples))
        out = {}
        for a, v in zip(self.atom_decoder, atom_vals):
            out[prefix + ATOM_CLASS_NAMES[a]] = float(v)
        for name, v in zip(BOND_CLASS_NAMES, bond_vals):
            out[prefix + name] = float(v)
        return out
    # TODO(synk): wandb logging / distributed dist_reduce_fx='sum' omitted (I/O, not compute).


# ------------------------------ reference ---------------------------------

def _ref_ce(preds, target):
    d = preds.shape[-1]
    t = target.reshape(-1, d).astype(jnp.float32)
    p = preds.reshape(-1, d).astype(jnp.float32)
    mask = jnp.any(t != 0.0, axis=-1)
    prob = jax.nn.softmax(p, axis=-1)
    log_p = jnp.maximum(jnp.log(prob), -100.0)
    log_1mp = jnp.maximum(jnp.log(1.0 - prob), -100.0)
    bce = -(t * log_p + (1.0 - t) * log_1mp)
    ce = jnp.sum(bce * mask[:, None].astype(jnp.float32), axis=0)
    return ce, jnp.sum(mask.astype(jnp.float32))


# -------------------------------- driver -----------------------------------

if __name__ == "__main__":
    key = jax.random.PRNGKey(0)
    bs, n = 2, 8
    dx = len(ATOM_DECODER)   # 13 atom classes
    de = 5                   # 5 bond classes

    kx, ke, ktx, kte, km, kme = jax.random.split(key, 6)

    # predictions: raw logits
    masked_pred_X = jax.random.normal(kx, (bs, n, dx), jnp.float32)
    masked_pred_E = jax.random.normal(ke, (bs, n, n, de), jnp.float32)

    # targets: one-hot, with some rows fully zeroed (masked-out nodes / edges)
    node_cls = jax.random.randint(ktx, (bs, n), 0, dx)
    node_mask = jax.random.bernoulli(km, 0.75, (bs, n)).astype(jnp.float32)
    true_X = jax.nn.one_hot(node_cls, dx, dtype=jnp.float32) * node_mask[..., None]

    edge_cls = jax.random.randint(kte, (bs, n, n), 0, de)
    edge_mask = jax.random.bernoulli(kme, 0.6, (bs, n, n)).astype(jnp.float32)
    true_E = jax.nn.one_hot(edge_cls, de, dtype=jnp.float32) * edge_mask[..., None]

    metrics = TrainMolecularMetricsPallas(ATOM_DECODER)
    to_log = metrics.forward(masked_pred_X, masked_pred_E, true_X, true_E, log=True)
    jax.block_until_ready(metrics.atom_ce)
    jax.block_until_ready(metrics.bond_ce)

    # sanity check against a pure-JAX reference of the same math
    ref_ce_x, ref_cnt_x = _ref_ce(masked_pred_X, true_X)
    ref_ce_e, ref_cnt_e = _ref_ce(masked_pred_E, true_E)
    assert jnp.allclose(metrics.atom_ce, ref_ce_x, rtol=1e-5, atol=1e-4), "atom CE mismatch"
    assert jnp.allclose(metrics.bond_ce, ref_ce_e, rtol=1e-5, atol=1e-4), "bond CE mismatch"
    assert float(metrics.atom_samples) == float(ref_cnt_x), "atom sample count mismatch"
    assert float(metrics.bond_samples) == float(ref_cnt_e), "bond sample count mismatch"
    assert len(to_log) == dx + de

    print("KERNEL_OK")
</pallas_src>

<mosaic_0001>
module attributes {stable_mosaic.version = 11 : i64} {
  func.func @_ce_kernel(%arg0: i32, %arg1: i32, %arg2: memref<13x16xf32, #tpu.memory_space<vmem>>, %arg3: memref<13x16xf32, #tpu.memory_space<vmem>>, %arg4: memref<1x13x1xf32, #tpu.memory_space<vmem>>, %arg5: memref<1x1x1xf32, #tpu.memory_space<vmem>>) attributes {dimension_semantics = [#tpu.dimension_semantics<parallel>, #tpu.dimension_semantics<arbitrary>], iteration_bounds = array<i64: 1, 1>, scalar_prefetch = 0 : i64, scratch_operands = 0 : i64, tpu.core_type = #tpu.core_type<tc>, window_params = [{transform_indices = @transform_0, window_bounds = array<i64: 13, 16>}, {transform_indices = @transform_1, window_bounds = array<i64: 13, 16>}, {transform_indices = @transform_2, window_bounds = array<i64: 1, 13, 1>}, {transform_indices = @transform_3, window_bounds = array<i64: 1, 1, 1>}]} {
    %c0_i32 = arith.constant 0 : i32
    %0 = arith.cmpi eq, %arg1, %c0_i32 : i32
    %1 = arith.extui %0 : i1 to i32
    %c0_i32_0 = arith.constant 0 : i32
    %2 = arith.cmpi ne, %1, %c0_i32_0 : i32
    scf.if %2 {
      %cst_31 = arith.constant 0.000000e+00 : f32
      %74 = vector.broadcast %cst_31 : f32 to vector<1x13x1xf32>
      %c0_32 = arith.constant 0 : index
      %c0_33 = arith.constant 0 : index
      %c0_34 = arith.constant 0 : index
      %75 = vector.load %arg4[%c0_32, %c0_33, %c0_34] : memref<1x13x1xf32, #tpu.memory_space<vmem>>, vector<1x13x1xf32>
      tpu.vector_store %arg4[%c0_32, %c0_33, %c0_34], %74 {strides = array<i32>} : memref<1x13x1xf32, #tpu.memory_space<vmem>>, vector<1x13x1xf32>,
      %cst_35 = arith.constant 0.000000e+00 : f32
      %76 = vector.broadcast %cst_35 : f32 to vector<1x1x1xf32>
      %c0_36 = arith.constant 0 : index
      %c0_37 = arith.constant 0 : index
      %c0_38 = arith.constant 0 : index
      %77 = vector.load %arg5[%c0_36, %c0_37, %c0_38] : memref<1x1x1xf32, #tpu.memory_space<vmem>>, vector<1x1x1xf32>
      tpu.vector_store %arg5[%c0_36, %c0_37, %c0_38], %76 {strides = array<i32>} : memref<1x1x1xf32, #tpu.memory_space<vmem>>, vector<1x1x1xf32>,
    } else {
    }
    %c1_i32 = arith.constant 1 : i32
    %3 = arith.muli %arg0, %c1_i32 : i32
    %4 = arith.addi %3, %arg1 : i32
    %c16_i32 = arith.constant 16 : i32
    %5 = arith.muli %4, %c16_i32 : i32
    %6 = tpu.iota {dimensions = array<i32: 1>} : vector<1x16xi32>
    %7 = vector.broadcast %5 : i32 to vector<1x16xi32>
    %8 = arith.addi %7, %6 : vector<1x16xi32>
    %c16_i32_1 = arith.constant 16 : i32
    %9 = vector.broadcast %c16_i32_1 : i32 to vector<1x16xi32>
    %10 = arith.cmpi slt, %8, %9 : vector<1x16xi32>
    %c0 = arith.constant 0 : index
    %c0_2 = arith.constant 0 : index
    %11 = vector.load %arg3[%c0, %c0_2] : memref<13x16xf32, #tpu.memory_space<vmem>>, vector<13x16xf32>
    %cst = arith.constant 0.000000e+00 : f32
    %12 = vector.shape_cast %10 : vector<1x16xi1> to vector<1x16xi1>
    %13 = vector.broadcast %12 : vector<1x16xi1> to vector<13x16xi1>
    %14 = vector.broadcast %cst : f32 to vector<13x16xf32>
    %15 = arith.select %13, %11, %14 : vector<13x16xi1>, vector<13x16xf32>
    %cst_3 = arith.constant 0.000000e+00 : f32
    %16 = vector.broadcast %cst_3 : f32 to vector<13x16xf32>
    %17 = arith.cmpf one, %15, %16 : vector<13x16xf32>
    %cst_4 = arith.constant 1.000000e+00 : f32
    %cst_5 = arith.constant 0.000000e+00 : f32
    %18 = vector.broadcast %cst_4 : f32 to vector<13x16xf32>
    %19 = vector.broadcast %cst_5 : f32 to vector<13x16xf32>
    %20 = arith.select %17, %18, %19 : vector<13x16xi1>, vector<13x16xf32>
    %cst_6 = arith.constant dense<0xFF800000> : vector<16xf32>
    %21 = vector.multi_reduction <maximumf>, %20, %cst_6 [0] : vector<13x16xf32> to vector<16xf32>
    %cst_7 = arith.constant 0.000000e+00 : f32
    %22 = vector.broadcast %cst_7 : f32 to vector<16xf32>
    %23 = arith.cmpf ogt, %21, %22 : vector<16xf32>
    %24 = vector.shape_cast %23 : vector<16xi1> to vector<1x16xi1>
    %c0_8 = arith.constant 0 : index
    %c0_9 = arith.constant 0 : index
    %25 = vector.load %arg2[%c0_8, %c0_9] : memref<13x16xf32, #tpu.memory_space<vmem>>, vector<13x16xf32>
    %cst_10 = arith.constant 0.000000e+00 : f32
    %26 = vector.shape_cast %24 : vector<1x16xi1> to vector<1x16xi1>
    %27 = vector.broadcast %26 : vector<1x16xi1> to vector<13x16xi1>
    %28 = vector.broadcast %cst_10 : f32 to vector<13x16xf32>
    %29 = arith.select %27, %25, %28 : vector<13x16xi1>, vector<13x16xf32>
    %30 = arith.extui %24 : vector<1x16xi1> to vector<1x16xi32>
    %31 = arith.sitofp %30 : vector<1x16xi32> to vector<1x16xf32>
    %cst_11 = arith.constant dense<0xFF800000> : vector<16xf32>
    %32 = vector.multi_reduction <maximumf>, %29, %cst_11 [0] : vector<13x16xf32> to vector<16xf32>
    %33 = vector.shape_cast %32 : vector<16xf32> to vector<1x16xf32>
    %34 = vector.broadcast %33 : vector<1x16xf32> to vector<13x16xf32>
    %35 = arith.subf %29, %34 : vector<13x16xf32>
    %36 = math.exp %35 : vector<13x16xf32>
    %cst_12 = arith.constant dense<0.000000e+00> : vector<16xf32>
    %37 = vector.multi_reduction <add>, %36, %cst_12 [0] : vector<13x16xf32> to vector<16xf32>
    %38 = vector.shape_cast %37 : vector<16xf32> to vector<1x16xf32>
    %39 = math.log %38 : vector<1x16xf32>
    %40 = vector.broadcast %33 : vector<1x16xf32> to vector<13x16xf32>
    %41 = arith.subf %29, %40 : vector<13x16xf32>
    %42 = vector.broadcast %39 : vector<1x16xf32> to vector<13x16xf32>
    %43 = arith.subf %41, %42 : vector<13x16xf32>
    %cst_13 = arith.constant -1.000000e+02 : f32
    %44 = vector.broadcast %cst_13 : f32 to vector<13x16xf32>
    %45 = arith.maximumf %43, %44 : vector<13x16xf32>
    %46 = vector.broadcast %38 : vector<1x16xf32> to vector<13x16xf32>
    %47 = arith.subf %46, %36 : vector<13x16xf32>
    %48 = math.log %47 : vector<13x16xf32>
    %49 = vector.broadcast %39 : vector<1x16xf32> to vector<13x16xf32>
    %50 = arith.subf %48, %49 : vector<13x16xf32>
    %cst_14 = arith.constant -1.000000e+02 : f32
    %51 = vector.broadcast %cst_14 : f32 to vector<13x16xf32>
    %52 = arith.maximumf %50, %51 : vector<13x16xf32>
    %53 = arith.mulf %15, %45 : vector<13x16xf32>
    %cst_15 = arith.constant 1.000000e+00 : f32
    %54 = vector.broadcast %cst_15 : f32 to vector<13x16xf32>
    %55 = arith.subf %54, %15 : vector<13x16xf32>
    %56 = arith.mulf %55, %52 : vector<13x16xf32>
    %57 = arith.addf %53, %56 : vector<13x16xf32>
    %cst_16 = arith.constant 0.000000e+00 : f32
    %58 = vector.broadcast %cst_16 : f32 to vector<13x16xf32>
    %59 = arith.subf %58, %57 : vector<13x16xf32>
    %60 = vector.broadcast %31 : vector<1x16xf32> to vector<13x16xf32>
    %61 = arith.mulf %59, %60 : vector<13x16xf32>
    %c0_17 = arith.constant 0 : index
    %c0_18 = arith.constant 0 : index
    %c0_19 = arith.constant 0 : index
    %62 = vector.load %arg4[%c0_17, %c0_18, %c0_19] : memref<1x13x1xf32, #tpu.memory_space<vmem>>, vector<1x13x1xf32>
    %cst_20 = arith.constant dense<0.000000e+00> : vector<13xf32>
    %63 = vector.multi_reduction <add>, %61, %cst_20 [1] : vector<13x16xf32> to vector<13xf32>
    %64 = vector.shape_cast %63 : vector<13xf32> to vector<13x1xf32>
    %65 = vector.shape_cast %64 : vector<13x1xf32> to vector<1x13x1xf32>
    %66 = arith.addf %62, %65 : vector<1x13x1xf32>
    %c0_21 = arith.constant 0 : index
    %c0_22 = arith.constant 0 : index
    %c0_23 = arith.constant 0 : index
    %67 = vector.load %arg4[%c0_21, %c0_22, %c0_23] : memref<1x13x1xf32, #tpu.memory_space<vmem>>, vector<1x13x1xf32>
    tpu.vector_store %arg4[%c0_21, %c0_22, %c0_23], %66 {strides = array<i32>} : memref<1x13x1xf32, #tpu.memory_space<vmem>>, vector<1x13x1xf32>,
    %c0_24 = arith.constant 0 : index
    %c0_25 = arith.constant 0 : index
    %c0_26 = arith.constant 0 : index
    %68 = vector.load %arg5[%c0_24, %c0_25, %c0_26] : memref<1x1x1xf32, #tpu.memory_space<vmem>>, vector<1x1x1xf32>
    %cst_27 = arith.constant dense<0.000000e+00> : vector<1xf32>
    %69 = vector.multi_reduction <add>, %31, %cst_27 [1] : vector<1x16xf32> to vector<1xf32>
    %70 = vector.shape_cast %69 : vector<1xf32> to vector<1x1xf32>
    %71 = vector.shape_cast %70 : vector<1x1xf32> to vector<1x1x1xf32>
    %72 = arith.addf %68, %71 : vector<1x1x1xf32>
    %c0_28 = arith.constant 0 : index
    %c0_29 = arith.constant 0 : index
    %c0_30 = arith.constant 0 : index
    %73 = vector.load %arg5[%c0_28, %c0_29, %c0_30] : memref<1x1x1xf32, #tpu.memory_space<vmem>>, vector<1x1x1xf32>
    tpu.vector_store %arg5[%c0_28, %c0_29, %c0_30], %72 {strides = array<i32>} : memref<1x1x1xf32, #tpu.memory_space<vmem>>, vector<1x1x1xf32>,
    return
  }
  func.func @transform_0(%arg0: i32, %arg1: i32) -> (i32, i32) {
    %c1_i32 = arith.constant 1 : i32
    %0 = arith.muli %arg0, %c1_i32 : i32
    %1 = arith.addi %0, %arg1 : i32
    %c0_i32 = arith.constant 0 : i32
    %2 = arith.minsi %1, %c0_i32 : i32
    %c0_i32_0 = arith.constant 0 : i32
    %c0_i32_1 = arith.constant 0 : i32
    return %c0_i32_0, %2 : i32, i32
  }
  func.func @transform_1(%arg0: i32, %arg1: i32) -> (i32, i32) {
    %c1_i32 = arith.constant 1 : i32
    %0 = arith.muli %arg0, %c1_i32 : i32
    %1 = arith.addi %0, %arg1 : i32
    %c0_i32 = arith.constant 0 : i32
    %2 = arith.minsi %1, %c0_i32 : i32
    %c0_i32_0 = arith.constant 0 : i32
    %c0_i32_1 = arith.constant 0 : i32
    return %c0_i32_0, %2 : i32, i32
  }
  func.func @transform_2(%arg0: i32, %arg1: i32) -> (i32, i32, i32) {
    %c0_i32 = arith.constant 0 : i32
    %c0_i32_0 = arith.constant 0 : i32
    %c0_i32_1 = arith.constant 0 : i32
    return %arg0, %c0_i32, %c0_i32_0 : i32, i32, i32
  }
  func.func @transform_3(%arg0: i32, %arg1: i32) -> (i32, i32, i32) {
    %c0_i32 = arith.constant 0 : i32
    %c0_i32_0 = arith.constant 0 : i32
    %c0_i32_1 = arith.constant 0 : i32
    return %arg0, %c0_i32, %c0_i32_0 : i32, i32, i32
  }
}

</mosaic_0001>

<llo_original>
// kernel: ce_sums_and_count.1
$region0: #{ce_sums_and_count.1}
  #allocation0 [shape = 'u32[]', space=smem, size = 0x4, offset = 0x4, fixed_abs, tag = 'smem constant byte address 0x4 - core index']
  #allocation1 [shape = 'u32[144,128]{1,0:T(1,128)}', space=vmem, size = 0x12000, scoped, tag = 'internal scratch']
  %s0 = inlined_call_operand.vmem [shape: f32[13,16], index: 0, kind: input, shape index: {}]
  %s1 = inlined_call_operand.vmem [shape: f32[13,16], index: 1, kind: input, shape index: {}]
  %s2 = inlined_call_operand.vmem [shape: f32[1,13,1], index: 2, kind: output, shape index: {0}]
  %s3 = inlined_call_operand.hbm [shape: f32[1,1,1], index: 3, kind: output, shape index: {1}]
  %4 = xla_tuple %s2, %s3
  %s5 = sld [smem:[#allocation0]]
  $region30: #{ce_sums_and_count.1} parent=0
    _
  %s7 = ssub.s32 1, %s5
  %s8 = scalar_select 0, %s7, %s5
  $region1: #{ce_sums_and_count.1} parent=0
    #allocation2 [shape = 'u8[512]{0}', space=vmem, size = 0x400, scoped, tag = 'output window, operand 1, single buffered']
    #allocation3 [shape = 's32[1]{0}', space=sflag, size = 0x4, scoped, tag = 'scoped memory for ce_sums_and_count.1']
    %9 = vsyncpa [#allocation3], 0
    // Predicated region
    $region2: #{ce_sums_and_count.1} parent=1 // pred_check
      _
    $region3: #{ce_sums_and_count.1} parent=1 // pred_check_branch
      %11 = sbr.rel (0) target = $region5
    $region4: #{ce_sums_and_count.1} parent=1 // pred_region
      %s12 = sadd.s32 0, 0
      %p13 = scmp.lt.s32.totalorder %s12, 0
      %s14 = scalar_select %p13, %s12, 0
      %p15 = scmp.lt.s32.totalorder %s14, 0
      %s16 = scalar_select %p15, %s14, 0
      %s17 = smul.addr %s16, 8
      %s18 = scalar_lea.vmem %s0, %s17
      %s19 = sadd.s32 0, 0
      %p20 = scmp.lt.s32.totalorder %s19, 0
      %s21 = scalar_select %p20, %s19, 0
    $region5: #{ce_sums_and_count.1} parent=1 // pred_fallthru
      _
    // Predicated region
    $region6: #{ce_sums_and_count.1} parent=1 // pred_check
      _
    $region7: #{ce_sums_and_count.1} parent=1 // pred_check_branch
      %23 = sbr.rel (0) target = $region9
    $region8: #{ce_sums_and_count.1} parent=1 // pred_region
      %s24 = sadd.s32 0, 0
      %p25 = scmp.lt.s32.totalorder %s24, 0
      %s26 = scalar_select %p25, %s24, 0
      %p27 = scmp.lt.s32.totalorder %s26, 0
      %s28 = scalar_select %p27, %s26, 0
      %s29 = smul.addr %s28, 8
      %s30 = scalar_lea.vmem %s1, %s29
      %s31 = sadd.s32 0, 0
      %p32 = scmp.lt.s32.totalorder %s31, 0
      %s33 = scalar_select %p32, %s31, 0
    $region9: #{ce_sums_and_count.1} parent=1 // pred_fallthru
      _
    %s34 = sadd.s32 0, 0
    %p35 = scmp.lt.s32.totalorder %s34, 0
    %s36 = scalar_select %p35, %s34, 0
    %p37 = scmp.lt.s32.totalorder %s36, 0
    %s38 = scalar_select %p37, %s36, 0
    %s39 = smul.addr %s38, 8
    %s40 = scalar_lea.vmem %s0, %s39
    %s41 = sadd.s32 0, 0
    %p42 = scmp.lt.s32.totalorder %s41, 0
    %s43 = scalar_select %p42, %s41, 0
    %p44 = scmp.lt.s32.totalorder %s43, 0
    %s45 = scalar_select %p44, %s43, 0
    %s46 = smul.addr %s45, 8
    %s47 = scalar_lea.vmem %s1, %s46
    %s48 = sadd.s32 0, 0
    %p49 = scmp.lt.s32.totalorder %s48, 0
    %s50 = scalar_select %p49, %s48, 0
    %p51 = scmp.lt.s32.totalorder %s50, 0
    %s52 = scalar_select %p51, %s50, 0
    %s53 = smul.addr %s52, 8
    %s54 = scalar_lea.vmem %s0, %s53
    %s55 = sadd.s32 0, 0
    %p56 = scmp.lt.s32.totalorder %s55, 0
    %s57 = scalar_select %p56, %s55, 0
    %s58 = sadd.s32 0, 0
    %p59 = scmp.lt.s32.totalorder %s58, 0
    %s60 = scalar_select %p59, %s58, 0
    %p61 = scmp.lt.s32.totalorder %s60, 0
    %s62 = scalar_select %p61, %s60, 0
    %s63 = smul.addr %s62, 8
    %s64 = scalar_lea.vmem %s1, %s63
    %s65 = sadd.s32 0, 0
    %p66 = scmp.lt.s32.totalorder %s65, 0
    %s67 = scalar_select %p66, %s65, 0
    %p68 = scmp.eq.s32.totalorder 0, 0
    // Predicated region
    $region10: #{ce_sums_and_count.1} parent=1 // pred_check
      %p69 = pneg %p68
    $region11: #{ce_sums_and_count.1} parent=1 // pred_check_branch
      %71 = sbr.rel (%p69) target = $region13
    $region12: #{ce_sums_and_count.1} parent=1 // pred_region
      %vm72 = vcmask 7168
      %73 = vst.msk [vmem:[%s2] sm:$0xff] %vm72, 0.0
      %vm74 = vcmask 4096
      %75 = vst.msk [vmem:[%s2 + $0x8] sm:$0x1f] %vm74, 0.0
      %vm76 = vcmask 0
      %77 = vst.msk [vmem:[#allocation2] sm:$0x1] %vm76, 0.0
    $region13: #{ce_sums_and_count.1} parent=1 // pred_fallthru
      _
    %s78 = sadd.s32 0, 0
    %s79 = smul.u32 %s78, 16
    %v80 = vlaneseq
    %v81 = vand.u32 %v80, 127
    %v82 = vstv %s79
    %v83 = vadd.s32 %v82, %v81
    %vm84 = vcmp.lt.s32.totalorder %v83, 16
    %v85 = vld [vmem:[%s64] sm:$0xff]
    %v86 = vld [vmem:[%s64 + $0x8] sm:$0x1f]
    %v87 = vsel %vm84, 1, 0
    %vm88 = vcmp.eq.s32.totalorder %v87, 1
    %v89 = vsel %vm88, %v85, 0.0
    %v90 = vsel %vm88, %v86, 0.0
    %vm91 = vcmp.ne.f32.partialorder %v89, 0.0
    %vm92 = vcmp.ne.f32.partialorder %v90, 0.0
    %v93 = vsel %vm91, 1.0, 0.0
    %v94 = vsel %vm92, 1.0, 0.0
    %vm95 = vcmask 130048
    %v96 = vsel %vm95, %v93, -inf
    %vm97 = vcmask 126976
    %v98 = vsel %vm97, %v94, -inf
    %v99 = vmax.f32 %v96, %v98
    %v100 = vrot.slane %v99, 4
    %v101 = vmax.f32 %v99, %v100
    %v102 = vrot.slane %v101, 2
    %v103 = vmax.f32 %v101, %v102
    %v104 = vrot.slane %v103, 1
    %v105 = vmax.f32 %v103, %v104
    %vm106 = vcmp.gt.f32.partialorder %v105, 0.0
    %v107 = vld [vmem:[%s54] sm:$0xff]
    %v108 = vld [vmem:[%s54 + $0x8] sm:$0x1f]
    %v109 = vsel %vm106, 1, 0
    %vm110 = vcmp.eq.s32.totalorder %v109, 1
    %v113 = vrot.slane %v107, 1
    %v114 = vrot.slane %v107, 2
    %v115 = vrot.slane %v107, 3
    %v116 = vrot.slane %v107, 4
    %v117 = vrot.slane %v107, 5
    %v118 = vrot.slane %v107, 6
    %v119 = vrot.slane %v107, 7
    %v120 = vrot.slane %v108, 1
    %v121 = vrot.slane %v108, 2
    %v122 = vrot.slane %v108, 3
    %v123 = vrot.slane %v108, 4
    %v137 = vsel %vm110, %v107, 0.0
    %v138 = vsel %vm110, %v113, 0.0
    %v139 = vsel %vm110, %v114, 0.0
    %v140 = vsel %vm110, %v115, 0.0
    %v141 = vsel %vm110, %v116, 0.0
    %v142 = vsel %vm110, %v117, 0.0
    %v143 = vsel %vm110, %v118, 0.0
    %v144 = vsel %vm110, %v119, 0.0
    %v145 = vsel %vm110, %v108, 0.0
    %v146 = vsel %vm110, %v120, 0.0
    %v147 = vsel %vm110, %v121, 0.0
    %v148 = vsel %vm110, %v122, 0.0
    %v149 = vsel %vm110, %v123, 0.0
    %v150 = vcvt.s32.f32 %v109
    %vm151 = vcmask 122880
    %v152 = vsel %vm151, %v137, -inf
    %v153 = vsel %vm151, %v138, -inf
    %v154 = vsel %vm151, %v139, -inf
    %v155 = vsel %vm151, %v140, -inf
    %v156 = vsel %vm151, %v141, -inf
    %v157 = vmax.f32 %v152, %v156
    %v158 = vsel %vm151, %v142, -inf
    %v159 = vmax.f32 %v153, %v158
    %v160 = vsel %vm151, %v143, -inf
    %v161 = vmax.f32 %v154, %v160
    %v162 = vsel %vm151, %v144, -inf
    %v163 = vmax.f32 %v155, %v162
    %v164 = vsel %vm151, %v145, -inf
    %v165 = vmax.f32 %v157, %v164
    %v166 = vsel %vm151, %v146, -inf
    %v167 = vmax.f32 %v159, %v166
    %v168 = vsel %vm151, %v147, -inf
    %v169 = vmax.f32 %v161, %v168
    %v170 = vsel %vm151, %v148, -inf
    %v171 = vmax.f32 %v163, %v170
    %v172 = vsel %vm151, %v149, -inf
    %v173 = vmax.f32 %v165, %v172
    %v174 = vmax.f32 %v173, %v167
    %v175 = vmax.f32 %v169, %v171
    %v176 = vmax.f32 %v174, %v175
    %v177 = vlaneseq
    %v178 = vshrl.u32 %v177, 7
    %v179 = vsub.s32 0, %v178
    %v180 = vrot.slane %v176, %v179
    %v181 = vsub.f32 %v137, %v180
    %v182 = vsub.f32 %v138, %v180
    %v183 = vsub.f32 %v139, %v180
    %v184 = vsub.f32 %v140, %v180
    %v185 = vsub.f32 %v141, %v180
    %v186 = vsub.f32 %v142, %v180
    %v187 = vsub.f32 %v143, %v180
    %v188 = vsub.f32 %v144, %v180
    %v189 = vsub.f32 %v145, %v180
    %v190 = vsub.f32 %v146, %v180
    %v191 = vsub.f32 %v147, %v180
    %v192 = vsub.f32 %v148, %v180
    %v193 = vsub.f32 %v149, %v180
    %v194 = vmul.f32 %v181, 1.442695
    %v195 = vpow.pop %v194
    %v196 = vmul.f32 %v182, 1.442695
    %v197 = vpow.pop %v196
    %v198 = vmul.f32 %v183, 1.442695
    %v199 = vpow.pop %v198
    %v200 = vmul.f32 %v184, 1.442695
    %v201 = vpow.pop %v200
    %v202 = vmul.f32 %v185, 1.442695
    %v203 = vpow.pop %v202
    %v204 = vmul.f32 %v186, 1.442695
    %v205 = vpow.pop %v204
    %v206 = vmul.f32 %v187, 1.442695
    %v207 = vpow.pop %v206
    %v208 = vmul.f32 %v188, 1.442695
    %v209 = vpow.pop %v208
    %v210 = vmul.f32 %v189, 1.442695
    %v211 = vpow.pop %v210
    %v212 = vmul.f32 %v190, 1.442695
    %v213 = vpow.pop %v212
    %v214 = vmul.f32 %v191, 1.442695
    %v215 = vpow.pop %v214
    %v216 = vmul.f32 %v192, 1.442695
    %v217 = vpow.pop %v216
    %v218 = vmul.f32 %v193, 1.442695
    %v219 = vpow.pop %v218
    %v233 = vrot.slane %v197, 7
    %vm234 = vcmask 1041409
    %v235 = vsel %vm234, %v233, %v195
    %v236 = vrot.slane %v199, 6
    %vm237 = vcmask 1042434
    %v238 = vsel %vm237, %v236, %v235
    %v239 = vrot.slane %v201, 5
    %vm240 = vcmask 1043459
    %v241 = vsel %vm240, %v239, %v238
    %v242 = vrot.slane %v203, 4
    %vm243 = vcmask 1044484
    %v244 = vsel %vm243, %v242, %v241
    %v245 = vrot.slane %v205, 3
    %vm246 = vcmask 1045509
    %v247 = vsel %vm246, %v245, %v244
    %v248 = vrot.slane %v207, 2
    %vm249 = vcmask 1046534
    %v250 = vsel %vm249, %v248, %v247
    %v251 = vrot.slane %v209, 1
    %vm252 = vcmask 1047559
    %v253 = vsel %vm252, %v251, %v250
    %v254 = vrot.slane %v213, 7
    %v255 = vsel %vm234, %v254, %v211
    %v256 = vrot.slane %v215, 6
    %v257 = vsel %vm237, %v256, %v255
    %v258 = vrot.slane %v217, 5
    %v259 = vsel %vm240, %v258, %v257
    %v260 = vrot.slane %v219, 4
    %v261 = vsel %vm243, %v260, %v259
    %v264 = vsel %vm95, %v253, 0.0
    %v265 = vsel %vm97, %v261, 0.0
    %v266 = vadd.f32 %v264, %v265
    %v267 = vrot.slane %v266, 4
    %v268 = vadd.f32 %v266, %v267
    %v269 = vrot.slane %v268, 2
    %v270 = vadd.f32 %v268, %v269
    %v271 = vrot.slane %v270, 1
    %v272 = vadd.f32 %v270, %v271
    %v273 = vlog2.pop %v272
    %v274 = vmul.f32 %v273, 0.6931472
    %v275 = vlaneseq
    %v276 = vshrl.u32 %v275, 7
    %v277 = vsub.s32 0, %v276
    %v278 = vrot.slane %v274, %v277
    %v279 = vsub.f32 %v181, %v278
    %v280 = vsub.f32 %v182, %v278
    %v281 = vsub.f32 %v183, %v278
    %v282 = vsub.f32 %v184, %v278
    %v283 = vsub.f32 %v185, %v278
    %v284 = vsub.f32 %v186, %v278
    %v285 = vsub.f32 %v187, %v278
    %v286 = vsub.f32 %v188, %v278
    %v287 = vsub.f32 %v189, %v278
    %v288 = vsub.f32 %v190, %v278
    %v289 = vsub.f32 %v191, %v278
    %v290 = vsub.f32 %v192, %v278
    %v291 = vsub.f32 %v193, %v278
    %v292 = vmax.f32 %v279, -100.0
    %v293 = vmax.f32 %v280, -100.0
    %v294 = vmax.f32 %v281, -100.0
    %v295 = vmax.f32 %v282, -100.0
    %v296 = vmax.f32 %v283, -100.0
    %v297 = vmax.f32 %v284, -100.0
    %v298 = vmax.f32 %v285, -100.0
    %v299 = vmax.f32 %v286, -100.0
    %v300 = vmax.f32 %v287, -100.0
    %v301 = vmax.f32 %v288, -100.0
    %v302 = vmax.f32 %v289, -100.0
    %v303 = vmax.f32 %v290, -100.0
    %v304 = vmax.f32 %v291, -100.0
    %v305 = vlaneseq
    %v306 = vshrl.u32 %v305, 7
    %v307 = vsub.s32 0, %v306
    %v308 = vrot.slane %v272, %v307
    %v309 = vsub.f32 %v308, %v253
    %v310 = vsub.f32 %v308, %v261
    %v311 = vlog2.pop %v309
    %v312 = vmul.f32 %v311, 0.6931472
    %v313 = vlog2.pop %v310
    %v314 = vmul.f32 %v313, 0.6931472
    %v315 = vsub.f32 %v312, %v278
    %v316 = vsub.f32 %v314, %v278
    %v317 = vmax.f32 %v315, -100.0
    %v318 = vmax.f32 %v316, -100.0
    %v332 = vrot.slane %v293, 7
    %v333 = vsel %vm234, %v332, %v292
    %v334 = vrot.slane %v294, 6
    %v335 = vsel %vm237, %v334, %v333
    %v336 = vrot.slane %v295, 5
    %v337 = vsel %vm240, %v336, %v335
    %v338 = vrot.slane %v296, 4
    %v339 = vsel %vm243, %v338, %v337
    %v340 = vrot.slane %v297, 3
    %v341 = vsel %vm246, %v340, %v339
    %v342 = vrot.slane %v298, 2
    %v343 = vsel %vm249, %v342, %v341
    %v344 = vrot.slane %v299, 1
    %v345 = vsel %vm252, %v344, %v343
    %v346 = vrot.slane %v301, 7
    %v347 = vsel %vm234, %v346, %v300
    %v348 = vrot.slane %v302, 6
    %v349 = vsel %vm237, %v348, %v347
    %v350 = vrot.slane %v303, 5
    %v351 = vsel %vm240, %v350, %v349
    %v352 = vrot.slane %v304, 4
    %v353 = vsel %vm243, %v352, %v351
    %v356 = vmul.f32 %v89, %v345
    %v357 = vmul.f32 %v90, %v353
    %v358 = vsub.f32 1.0, %v89
    %v359 = vsub.f32 1.0, %v90
    %v360 = vmul.f32 %v358, %v317
    %v361 = vmul.f32 %v359, %v318
    %v362 = vadd.f32 %v356, %v360
    %v363 = vadd.f32 %v357, %v361
    %v364 = vsub.f32 0.0, %v362
    %v365 = vsub.f32 0.0, %v363
    %v366 = vmul.f32 %v364, %v150
    %v367 = vmul.f32 %v365, %v150
    %v368 = vld [vmem:[%s2] sm:$0xff]
    %v369 = vld [vmem:[%s2 + $0x8] sm:$0x1f]
    %v370 = vsel %vm95, %v366, 0.0
    %371 = vadd.xlane.f32.xlu0 %v370
    %v372 = vpop.xlane.xlu0 %371
    %v373 = vsel %vm97, %v367, 0.0
    %374 = vadd.xlane.f32.xlu0 %v373
    %v375 = vpop.xlane.xlu0 %374
    %v376 = vadd.f32 %v368, %v372
    %v377 = vadd.f32 %v369, %v375
    %vm378 = vcmask 7168
    %379 = vst.msk [vmem:[%s2] sm:$0xff] %vm378, %v376
    %vm380 = vcmask 4096
    %381 = vst.msk [vmem:[%s2 + $0x8] sm:$0x1f] %vm380, %v377
    %v382 = vld [vmem:[#allocation2] sm:$0x1]
    %v383 = vsel %vm95, %v150, 0.0
    %384 = vadd.xlane.f32.xlu0 %v383
    %v385 = vpop.xlane.xlu0 %384
    %v386 = vadd.f32 %v382, %v385
    %vm387 = vcmask 0
    %388 = vst.msk [vmem:[#allocation2] sm:$0x1] %vm387, %v386
    // Predicated region
    $region14: #{ce_sums_and_count.1} parent=1 // pred_check
      _
    $region15: #{ce_sums_and_count.1} parent=1 // pred_check_branch
      %390 = sbr.rel (0) target = $region17
    $region16: #{ce_sums_and_count.1} parent=1 // pred_region
      _
    $region17: #{ce_sums_and_count.1} parent=1 // pred_fallthru
      _
    // Predicated region
    $region18: #{ce_sums_and_count.1} parent=1 // pred_check
      _
    $region19: #{ce_sums_and_count.1} parent=1 // pred_check_branch
      %392 = sbr.rel (0) target = $region21
    $region20: #{ce_sums_and_count.1} parent=1 // pred_region
      %s394 = ssub.s32 16, 16
      %395 = vsyncadd [#allocation3], %s394
      %s397 = sshll.u32 [#allocation2], 4
      %s398 = int_to_ptr.vmem [resolvable:$true] %s397
      %400 = dma.vmem_to_hbm [thread:$0]  %s398, 16, %s3, [#allocation3]
    $region21: #{ce_sums_and_count.1} parent=1 // pred_fallthru
      _
    // Predicated region
    $region22: #{ce_sums_and_count.1} parent=1 // pred_check
      _
    $region23: #{ce_sums_and_count.1} parent=1 // pred_check_branch
      %402 = sbr.rel (0) target = $region25
    $region24: #{ce_sums_and_count.1} parent=1 // pred_region
      _
    $region25: #{ce_sums_and_count.1} parent=1 // pred_fallthru
      _
    // Predicated region
    $region26: #{ce_sums_and_count.1} parent=1 // pred_check
      _
    $region27: #{ce_sums_and_count.1} parent=1 // pred_check_branch
      %404 = sbr.rel (0) target = $region29
    $region28: #{ce_sums_and_count.1} parent=1 // pred_region
      %405 = dma.done [#allocation3], 16
    $region29: #{ce_sums_and_count.1} parent=1 // pred_fallthru
      _
    %406 = vsyncpa [#allocation3], 1

</llo_original>
